<compile_context>
chip_gen: v7x
topology: tpu7x:2x2x1
jax: 0.10.0
libtpu: 0.0.40
codegen_flags: <defaults>
</compile_context>

<pallas_src>
import functools

import jax
import jax.numpy as jnp
from jax import lax
from jax.experimental import pallas as pl
from jax.experimental.pallas import tpu as pltpu

_LANE = 128


def _vmem_budget_bytes():
    """(per-step tile budget, vmem_limit_bytes) with generation-aware headroom."""
    cap = 64 * 1024 * 1024  # conservative default: v7x physical VMEM per TC
    try:
        info = pltpu.get_tpu_info()
        c = getattr(info, "vmem_capacity_bytes", None)
        if c:
            cap = int(c)
    except Exception:
        pass
    budget = int(cap * 0.70)                       # headroom for compiler temps
    limit = int(min(cap - (4 << 20), budget + (8 << 20)))
    limit = max(limit, 32 << 20)
    return budget, limit


def _choose_tiling(B, Lq, Lk_pad, D, Dv, in_bytes, attn_bytes, mask_bytes,
                   budget, lq_tile=None, batch_tile=None):
    """Pick (batch_tile, lq_tile) so the per-step live set fits the VMEM budget."""

    def footprint(bt, t):
        kv = bt * Lk_pad * (D + Dv) * in_bytes      # K/V blocks, single-buffered
        qb = 2 * bt * t * D * in_bytes              # q block, double-buffered
        mb = 2 * bt * t * Lk_pad * mask_bytes       # mask block
        ob = 2 * bt * t * Dv * in_bytes             # output tile
        ab = 2 * bt * t * Lk_pad * attn_bytes       # attn output tile
        tmp = 4 * bt * t * Lk_pad * 4               # f32 scores / exp / attn + slack
        return kv + qb + mb + ob + ab + tmp

    if lq_tile is None:
        lq_tile = min(Lq, 8)
        for cand in (1024, 512, 256, 128, 64, 32, 16, 8):
            t = min(cand, Lq)
            if footprint(1, t) <= budget:
                lq_tile = t
                break
    else:
        lq_tile = max(1, min(int(lq_tile), Lq))

    if batch_tile is None:
        batch_tile = 1
        # Amortize per-grid-step overhead when the per-batch tile is tiny.
        while (batch_tile * 2 <= B
               and footprint(batch_tile * 2, lq_tile) <= budget
               and batch_tile * lq_tile * Lk_pad < 128 * 1024):
            batch_tile *= 2
    else:
        batch_tile = max(1, min(int(batch_tile), B))
    return batch_tile, lq_tile


def _kv_spec(block_shape, index_map):
    # K/V block index is constant across the inner q-tile axis -> single buffer.
    try:
        return pl.BlockSpec(block_shape, index_map, pipeline_mode=pl.Buffered(1))
    except (TypeError, AttributeError):
        return pl.BlockSpec(block_shape, index_map)


def _sdpa_kernel(*refs, inv_temperature, has_mask, attn_type,
                 lk_valid, lk_padded, mxu_dtype):
    if has_mask:
        q_ref, k_ref, v_ref, mask_ref, out_ref, attn_ref = refs
    else:
        q_ref, k_ref, v_ref, out_ref, attn_ref = refs
        mask_ref = None

    # Fold 1/temperature into q (O(bt*lq*D) VPU work instead of an
    # O(bt*lq*Lk) divide on the score tile), then feed the MXU in bf16 when
    # the inputs are f32 (f32 matmul is emulated and 3-6x slower).
    q = (q_ref[...] * inv_temperature).astype(mxu_dtype)   # (bt, lq, D)
    k = k_ref[...].astype(mxu_dtype)                        # (bt, Lk, D)

    # q @ k^T per batch without materializing k.T (contract last dims).
    scores = lax.dot_general(
        q, k, dimension_numbers=(((2,), (2,)), ((0,), (0,))),
        preferred_element_type=jnp.float32)                 # (bt, lq, Lk) f32

    if has_mask:
        m = mask_ref[...]
        masked = m if m.dtype == jnp.bool_ else (m != 0)
        scores = jnp.where(masked, jnp.float32(-1000000.0), scores)

    if lk_valid < lk_padded:
        # Padded key columns (wrapper pads Lk to a lane-dense multiple of 128):
        # -inf so they contribute exactly zero even for fully-masked rows.
        col = lax.broadcasted_iota(jnp.int32, scores.shape, scores.ndim - 1)
        scores = jnp.where(col >= lk_valid, jnp.float32(-jnp.inf), scores)

    if attn_type == "softmax":
        mx = jnp.max(scores, axis=-1, keepdims=True)
        e = jnp.exp(scores - mx)
        denom = jnp.sum(e, axis=-1, keepdims=True)
        attn = e * pl.reciprocal(denom)        # exact: returned rows sum to 1
    else:  # 'sigmoid' variant of the module
        attn = jax.nn.sigmoid(scores)

    # TODO(synk): nn.Dropout(0.1) is identity in eval mode; training-mode dropout
    # (pltpu.prng_seed + Bernoulli mask + 1/(1-p) scaling) is not applied here.

    attn_lo = attn.astype(mxu_dtype)                         # PV operand (bf16 path)
    v = v_ref[...].astype(mxu_dtype)                         # (bt, Lk, Dv)
    out = lax.dot_general(
        attn_lo, v, dimension_numbers=(((2,), (1,)), ((0,), (0,))),
        preferred_element_type=jnp.float32)                  # (bt, lq, Dv)

    if attn_ref.dtype == attn_lo.dtype:
        attn_ref[...] = attn_lo            # reuse the cast when attn is emitted low-prec
    else:
        attn_ref[...] = attn.astype(attn_ref.dtype)
    out_ref[...] = out.astype(out_ref.dtype)


def scaled_dot_product_attention(q, k, v, temperature, attn_mask=None,
                                 attn_type="softmax", lq_tile=None,
                                 batch_tile=None, attn_dtype=None,
                                 mxu_bf16=True):
    """Pallas equivalent of ScaledDotProductAttention.forward (eval mode).

    q: (B, Lq, D), k: (B, Lk, D), v: (B, Lk, Dv)
    attn_mask: optional (B, Lq, Lk); nonzero/True == masked position
    returns (output (B, Lq, Dv), attn (B, Lq, Lk))
    """
    B, Lq, D = q.shape
    Bk, Lk, Dk = k.shape
    Bv, Lkv, Dv = v.shape
    assert B == Bk == Bv and D == Dk and Lk == Lkv

    has_mask = attn_mask is not None
    if has_mask:
        assert attn_mask.shape == (B, Lq, Lk)
        # Keep 1-byte masks as-is (no extra HBM pass); convert wide int masks once.
        if attn_mask.dtype != jnp.bool_ and jnp.dtype(attn_mask.dtype).itemsize != 1:
            attn_mask = attn_mask != 0

    attn_dtype = q.dtype if attn_dtype is None else jnp.dtype(attn_dtype)
    mxu_dtype = jnp.bfloat16 if (mxu_bf16 and q.dtype == jnp.float32) else q.dtype

    # Pad Lk to a multiple of 128 so the dominant attn writeback is lane-dense.
    Lk_pad = ((Lk + _LANE - 1) // _LANE) * _LANE
    if Lk_pad != Lk:
        pad = Lk_pad - Lk
        k = jnp.pad(k, ((0, 0), (0, pad), (0, 0)))
        v = jnp.pad(v, ((0, 0), (0, pad), (0, 0)))
        if has_mask:
            attn_mask = jnp.pad(attn_mask, ((0, 0), (0, 0), (0, pad)))

    in_bytes = jnp.dtype(q.dtype).itemsize
    attn_bytes = attn_dtype.itemsize
    mask_bytes = 1 if has_mask else 0
    budget, vmem_limit = _vmem_budget_bytes()
    bt, lq_tile = _choose_tiling(B, Lq, Lk_pad, D, Dv, in_bytes, attn_bytes,
                                 mask_bytes, budget, lq_tile, batch_tile)

    grid = (pl.cdiv(B, bt), pl.cdiv(Lq, lq_tile))

    kernel = functools.partial(
        _sdpa_kernel,
        inv_temperature=1.0 / float(temperature),
        has_mask=has_mask,
        attn_type=attn_type,
        lk_valid=Lk,
        lk_padded=Lk_pad,
        mxu_dtype=mxu_dtype,
    )

    in_specs = [
        pl.BlockSpec((bt, lq_tile, D), lambda b, qi: (b, qi, 0)),
        _kv_spec((bt, Lk_pad, D), lambda b, qi: (b, 0, 0)),
        _kv_spec((bt, Lk_pad, Dv), lambda b, qi: (b, 0, 0)),
    ]
    args = [q, k, v]
    if has_mask:
        in_specs.append(pl.BlockSpec((bt, lq_tile, Lk_pad), lambda b, qi: (b, qi, 0)))
        args.append(attn_mask)

    out, attn = pl.pallas_call(
        kernel,
        out_shape=(
            jax.ShapeDtypeStruct((B, Lq, Dv), q.dtype),
            jax.ShapeDtypeStruct((B, Lq, Lk_pad), attn_dtype),
        ),
        grid_spec=pltpu.PrefetchScalarGridSpec(
            num_scalar_prefetch=0,
            grid=grid,
            in_specs=in_specs,
            out_specs=[
                pl.BlockSpec((bt, lq_tile, Dv), lambda b, qi: (b, qi, 0)),
                pl.BlockSpec((bt, lq_tile, Lk_pad), lambda b, qi: (b, qi, 0)),
            ],
        ),
        compiler_params=pltpu.CompilerParams(
            dimension_semantics=("parallel", "parallel"),
            vmem_limit_bytes=vmem_limit,
        ),
    )(*args)

    if Lk_pad != Lk:
        attn = attn[:, :, :Lk]
    return out, attn


def _reference(q, k, v, temperature, attn_mask=None, attn_type="softmax"):
    # Pure-JAX reference mirroring the PyTorch forward (eval mode).
    attn = jnp.einsum("bqd,bkd->bqk", q, k) / temperature
    if attn_mask is not None:
        attn = jnp.where(attn_mask, -1000000.0, attn)
    if attn_type == "softmax":
        attn = jax.nn.softmax(attn, axis=2)
    else:
        attn = jax.nn.sigmoid(attn)
    out = jnp.einsum("bqk,bkd->bqd", attn, v)
    return out, attn


if __name__ == "__main__":
    key = jax.random.PRNGKey(0)
    kq, kk, kv, km, krest = jax.random.split(key, 5)

    # bf16 MXU operands (f32 accumulation) -> tolerance relaxed vs pure-f32 matmul.
    TOL = dict(atol=2e-2, rtol=2e-2)

    # Test 1: module-like small shapes (batch=2, seq=8, hidden=32), masked softmax.
    B, Lq, Lk, D, Dv = 2, 8, 8, 32, 32
    temperature = float(D) ** 0.5
    q = jax.random.normal(kq, (B, Lq, D), dtype=jnp.float32)
    k = jax.random.normal(kk, (B, Lk, D), dtype=jnp.float32)
    v = jax.random.normal(kv, (B, Lk, Dv), dtype=jnp.float32)
    attn_mask = jax.random.bernoulli(km, 0.2, (B, Lq, Lk))

    out, attn = scaled_dot_product_attention(q, k, v, temperature, attn_mask)
    jax.block_until_ready((out, attn))
    ref_out, ref_attn = _reference(q, k, v, temperature, attn_mask)
    assert out.shape == ref_out.shape and attn.shape == ref_attn.shape
    assert jnp.allclose(out, ref_out, **TOL), "masked output mismatch"
    assert jnp.allclose(attn, ref_attn, **TOL), "masked attn mismatch"

    # Test 2: specialized no-mask path (no mask operand built or DMA'd).
    out2, attn2 = scaled_dot_product_attention(q, k, v, temperature, None)
    jax.block_until_ready((out2, attn2))
    ref_out2, ref_attn2 = _reference(q, k, v, temperature, None)
    assert jnp.allclose(out2, ref_out2, **TOL), "no-mask output mismatch"
    assert jnp.allclose(attn2, ref_attn2, **TOL), "no-mask attn mismatch"

    # Test 3: sigmoid attention variant of the module.
    out_s, attn_s = scaled_dot_product_attention(q, k, v, temperature, attn_mask,
                                                 attn_type="sigmoid")
    jax.block_until_ready((out_s, attn_s))
    ref_out_s, ref_attn_s = _reference(q, k, v, temperature, attn_mask,
                                       attn_type="sigmoid")
    assert jnp.allclose(out_s, ref_out_s, **TOL), "sigmoid output mismatch"
    assert jnp.allclose(attn_s, ref_attn_s, **TOL), "sigmoid attn mismatch"

    # Test 4: larger shapes, Lk not a multiple of 128 (exercises lane-dense
    # padding + slicing) and q-row tiling.
    kq2, kk2, kv2, km2 = jax.random.split(krest, 4)
    B2, Lq2, Lk2, D2, Dv2 = 2, 256, 200, 128, 128
    temp2 = float(D2) ** 0.5
    q2 = jax.random.normal(kq2, (B2, Lq2, D2), dtype=jnp.float32)
    k2 = jax.random.normal(kk2, (B2, Lk2, D2), dtype=jnp.float32)
    v2 = jax.random.normal(kv2, (B2, Lk2, Dv2), dtype=jnp.float32)
    mask2 = jax.random.bernoulli(km2, 0.2, (B2, Lq2, Lk2))

    out3, attn3 = scaled_dot_product_attention(q2, k2, v2, temp2, mask2, lq_tile=128)
    jax.block_until_ready((out3, attn3))
    ref_out3, ref_attn3 = _reference(q2, k2, v2, temp2, mask2)
    assert out3.shape == ref_out3.shape and attn3.shape == ref_attn3.shape
    assert jnp.allclose(out3, ref_out3, **TOL), "tiled output mismatch"
    assert jnp.allclose(attn3, ref_attn3, **TOL), "tiled attn mismatch"

    print("KERNEL_OK")
</pallas_src>

<mosaic_0001>
module attributes {stable_mosaic.version = 11 : i64} {
  func.func @_sdpa_kernel(%arg0: i32, %arg1: i32, %arg2: memref<2x8x32xf32, #tpu.memory_space<vmem>>, %arg3: memref<2x128x32xf32, #tpu.memory_space<vmem>>, %arg4: memref<2x128x32xf32, #tpu.memory_space<vmem>>, %arg5: memref<2x8x128xi32, #tpu.memory_space<vmem>>, %arg6: memref<2x8x32xf32, #tpu.memory_space<vmem>>, %arg7: memref<2x8x128xf32, #tpu.memory_space<vmem>>) attributes {dimension_semantics = [#tpu.dimension_semantics<parallel>, #tpu.dimension_semantics<parallel>], iteration_bounds = array<i64: 1, 1>, scalar_prefetch = 0 : i64, scratch_operands = 0 : i64, tpu.core_type = #tpu.core_type<tc>, window_params = [{transform_indices = @transform_0, window_bounds = array<i64: 2, 8, 32>}, {pipeline_mode = #tpu.pipeline_mode<synchronous>, transform_indices = @transform_1, window_bounds = array<i64: 2, 128, 32>}, {pipeline_mode = #tpu.pipeline_mode<synchronous>, transform_indices = @transform_2, window_bounds = array<i64: 2, 128, 32>}, {transform_indices = @transform_3, window_bounds = array<i64: 2, 8, 128>}, {transform_indices = @transform_4, window_bounds = array<i64: 2, 8, 32>}, {transform_indices = @transform_5, window_bounds = array<i64: 2, 8, 128>}]} {
    %c0 = arith.constant 0 : index
    %c0_0 = arith.constant 0 : index
    %c0_1 = arith.constant 0 : index
    %0 = vector.load %arg2[%c0, %c0_0, %c0_1] : memref<2x8x32xf32, #tpu.memory_space<vmem>>, vector<2x8x32xf32>
    %cst = arith.constant 0.176776692 : f32
    %1 = vector.broadcast %cst : f32 to vector<2x8x32xf32>
    %2 = arith.mulf %0, %1 : vector<2x8x32xf32>
    %3 = arith.truncf %2 : vector<2x8x32xf32> to vector<2x8x32xbf16>
    %c0_2 = arith.constant 0 : index
    %c0_3 = arith.constant 0 : index
    %c0_4 = arith.constant 0 : index
    %4 = vector.load %arg3[%c0_2, %c0_3, %c0_4] : memref<2x128x32xf32, #tpu.memory_space<vmem>>, vector<2x128x32xf32>
    %5 = arith.truncf %4 : vector<2x128x32xf32> to vector<2x128x32xbf16>
    %cst_5 = arith.constant dense<0.000000e+00> : vector<2x8x128xf32>
    %6 = tpu.matmul %3, %5, %cst_5 {dimension_numbers = #tpu.dot_dimension_numbers<[2], [2], [1], [1], [0, 0, 0, 1, 1, 1], [0], [0]>} : vector<2x8x32xbf16>, vector<2x128x32xbf16>, vector<2x8x128xf32> -> vector<2x8x128xf32>
    %c0_6 = arith.constant 0 : index
    %c0_7 = arith.constant 0 : index
    %c0_8 = arith.constant 0 : index
    %7 = vector.load %arg5[%c0_6, %c0_7, %c0_8] : memref<2x8x128xi32, #tpu.memory_space<vmem>>, vector<2x8x128xi32>
    %cst_9 = arith.constant dense<0> : vector<2x8x128xi32>
    %8 = arith.cmpi ne, %7, %cst_9 : vector<2x8x128xi32>
    %cst_10 = arith.constant -1.000000e+06 : f32
    %9 = vector.broadcast %cst_10 : f32 to vector<2x8x128xf32>
    %10 = arith.select %8, %9, %6 : vector<2x8x128xi1>, vector<2x8x128xf32>
    %11 = tpu.iota {dimensions = array<i32: 2>} : vector<2x8x128xi32>
    %c8_i32 = arith.constant 8 : i32
    %12 = vector.broadcast %c8_i32 : i32 to vector<2x8x128xi32>
    %13 = arith.cmpi sge, %11, %12 : vector<2x8x128xi32>
    %cst_11 = arith.constant 0xFF800000 : f32
    %14 = vector.broadcast %cst_11 : f32 to vector<2x8x128xf32>
    %15 = arith.select %13, %14, %10 : vector<2x8x128xi1>, vector<2x8x128xf32>
    %cst_12 = arith.constant dense<0xFF800000> : vector<2x8xf32>
    %16 = vector.multi_reduction <maximumf>, %15, %cst_12 [2] : vector<2x8x128xf32> to vector<2x8xf32>
    %17 = vector.shape_cast %16 : vector<2x8xf32> to vector<2x8x1xf32>
    %18 = vector.broadcast %17 : vector<2x8x1xf32> to vector<2x8x128xf32>
    %19 = arith.subf %15, %18 : vector<2x8x128xf32>
    %20 = math.exp %19 : vector<2x8x128xf32>
    %cst_13 = arith.constant dense<0.000000e+00> : vector<2x8xf32>
    %21 = vector.multi_reduction <add>, %20, %cst_13 [2] : vector<2x8x128xf32> to vector<2x8xf32>
    %22 = vector.shape_cast %21 : vector<2x8xf32> to vector<2x8x1xf32>
    %23 = tpu.reciprocal %22 : vector<2x8x1xf32> -> vector<2x8x1xf32>
    %24 = vector.broadcast %23 : vector<2x8x1xf32> to vector<2x8x128xf32>
    %25 = arith.mulf %20, %24 : vector<2x8x128xf32>
    %26 = arith.truncf %25 : vector<2x8x128xf32> to vector<2x8x128xbf16>
    %c0_14 = arith.constant 0 : index
    %c0_15 = arith.constant 0 : index
    %c0_16 = arith.constant 0 : index
    %27 = vector.load %arg4[%c0_14, %c0_15, %c0_16] : memref<2x128x32xf32, #tpu.memory_space<vmem>>, vector<2x128x32xf32>
    %28 = arith.truncf %27 : vector<2x128x32xf32> to vector<2x128x32xbf16>
    %cst_17 = arith.constant dense<0.000000e+00> : vector<2x8x32xf32>
    %29 = tpu.matmul %26, %28, %cst_17 {dimension_numbers = #tpu.dot_dimension_numbers<[2], [1], [1], [2], [0, 0, 0, 1, 1, 2], [0], [0]>} : vector<2x8x128xbf16>, vector<2x128x32xbf16>, vector<2x8x32xf32> -> vector<2x8x32xf32>
    %c0_18 = arith.constant 0 : index
    %c0_19 = arith.constant 0 : index
    %c0_20 = arith.constant 0 : index
    %30 = vector.load %arg7[%c0_18, %c0_19, %c0_20] : memref<2x8x128xf32, #tpu.memory_space<vmem>>, vector<2x8x128xf32>
    tpu.vector_store %arg7[%c0_18, %c0_19, %c0_20], %25 {strides = array<i32>} : memref<2x8x128xf32, #tpu.memory_space<vmem>>, vector<2x8x128xf32>,
    %c0_21 = arith.constant 0 : index
    %c0_22 = arith.constant 0 : index
    %c0_23 = arith.constant 0 : index
    %31 = vector.load %arg6[%c0_21, %c0_22, %c0_23] : memref<2x8x32xf32, #tpu.memory_space<vmem>>, vector<2x8x32xf32>
    tpu.vector_store %arg6[%c0_21, %c0_22, %c0_23], %29 {strides = array<i32>} : memref<2x8x32xf32, #tpu.memory_space<vmem>>, vector<2x8x32xf32>,
    return
  }
  func.func @transform_0(%arg0: i32, %arg1: i32) -> (i32, i32, i32) {
    %c0_i32 = arith.constant 0 : i32
    %c0_i32_0 = arith.constant 0 : i32
    return %arg0, %arg1, %c0_i32 : i32, i32, i32
  }
  func.func @transform_1(%arg0: i32, %arg1: i32) -> (i32, i32, i32) {
    %c0_i32 = arith.constant 0 : i32
    %c0_i32_0 = arith.constant 0 : i32
    %c0_i32_1 = arith.constant 0 : i32
    return %arg0, %c0_i32, %c0_i32_0 : i32, i32, i32
  }
  func.func @transform_2(%arg0: i32, %arg1: i32) -> (i32, i32, i32) {
    %c0_i32 = arith.constant 0 : i32
    %c0_i32_0 = arith.constant 0 : i32
    %c0_i32_1 = arith.constant 0 : i32
    return %arg0, %c0_i32, %c0_i32_0 : i32, i32, i32
  }
  func.func @transform_3(%arg0: i32, %arg1: i32) -> (i32, i32, i32) {
    %c0_i32 = arith.constant 0 : i32
    %c0_i32_0 = arith.constant 0 : i32
    return %arg0, %arg1, %c0_i32 : i32, i32, i32
  }
  func.func @transform_4(%arg0: i32, %arg1: i32) -> (i32, i32, i32) {
    %c0_i32 = arith.constant 0 : i32
    %c0_i32_0 = arith.constant 0 : i32
    return %arg0, %arg1, %c0_i32 : i32, i32, i32
  }
  func.func @transform_5(%arg0: i32, %arg1: i32) -> (i32, i32, i32) {
    %c0_i32 = arith.constant 0 : i32
    %c0_i32_0 = arith.constant 0 : i32
    return %arg0, %arg1, %c0_i32 : i32, i32, i32
  }
}

</mosaic_0001>

<llo_original>
// kernel: tpu_custom_call.1
$region0: #{tpu_custom_call.1}
  #allocation0 [shape = 'u32[]', space=smem, size = 0x4, offset = 0x4, fixed_abs, tag = 'smem constant byte address 0x4 - core index']
  #allocation1 [shape = 'u32[144,128]{1,0:T(1,128)}', space=vmem, size = 0x12000, scoped, tag = 'internal scratch']
  %s0 = inlined_call_operand.vmem [shape: f32[2,8,32], index: 0, kind: input, shape index: {}]
  %s1 = inlined_call_operand.vmem [shape: f32[2,128,32], index: 1, kind: input, shape index: {}]
  %s2 = inlined_call_operand.vmem [shape: f32[2,128,32], index: 2, kind: input, shape index: {}]
  %s3 = inlined_call_operand.vmem [shape: s32[2,8,128], index: 3, kind: input, shape index: {}]
  %s4 = inlined_call_operand.hbm [shape: f32[2,8,32], index: 4, kind: output, shape index: {0}]
  %s5 = inlined_call_operand.hbm [shape: f32[2,8,128], index: 5, kind: output, shape index: {1}]
  %6 = xla_tuple %s4, %s5
  %s7 = sld [smem:[#allocation0]]
  $region34: #{tpu_custom_call.1} parent=0
    _
  %s9 = ssub.s32 1, %s7
  %s10 = scalar_select 0, %s9, %s7
  $region1: #{tpu_custom_call.1} parent=0
    #allocation2 [shape = 'u8[8192]{0}', space=vmem, size = 0x2000, scoped, tag = 'output window, operand 0, single buffered']
    #allocation3 [shape = 's32[1]{0}', space=sflag, size = 0x4, scoped, tag = 'scoped memory for tpu_custom_call.1']
    #allocation4 [shape = 'u8[8192]{0}', space=vmem, size = 0x2000, scoped, tag = 'output window, operand 1, single buffered']
    #allocation5 [shape = 's32[1]{0}', space=sflag, size = 0x4, scoped, tag = 'scoped memory for tpu_custom_call.1']
    %11 = vsyncpa [#allocation3], 0
    %12 = vsyncpa [#allocation5], 0
    // Predicated region
    $region2: #{tpu_custom_call.1} parent=1 // pred_check
      _
    $region3: #{tpu_custom_call.1} parent=1 // pred_check_branch
      %14 = sbr.rel (0) target = $region5
    $region4: #{tpu_custom_call.1} parent=1 // pred_region
      _
    $region5: #{tpu_custom_call.1} parent=1 // pred_fallthru
      _
    // Predicated region
    $region6: #{tpu_custom_call.1} parent=1 // pred_check
      _
    $region7: #{tpu_custom_call.1} parent=1 // pred_check_branch
      %16 = sbr.rel (0) target = $region9
    $region8: #{tpu_custom_call.1} parent=1 // pred_region
      _
    $region9: #{tpu_custom_call.1} parent=1 // pred_fallthru
      _
    // Predicated region
    $region10: #{tpu_custom_call.1} parent=1 // pred_check
      _
    $region11: #{tpu_custom_call.1} parent=1 // pred_check_branch
      %18 = sbr.rel (0) target = $region13
    $region12: #{tpu_custom_call.1} parent=1 // pred_region
      _
    $region13: #{tpu_custom_call.1} parent=1 // pred_fallthru
      _
    // Predicated region
    $region14: #{tpu_custom_call.1} parent=1 // pred_check
      _
    $region15: #{tpu_custom_call.1} parent=1 // pred_check_branch
      %20 = sbr.rel (0) target = $region17
    $region16: #{tpu_custom_call.1} parent=1 // pred_region
      _
    $region17: #{tpu_custom_call.1} parent=1 // pred_fallthru
      _
    %v22 = vld [vmem:[%s0] sm:$0xff]
    %v23 = vld [vmem:[%s0 + $0x8] sm:$0xff]
    %v24 = vmul.f32 %v22, 0.17677669
    %v25 = vmul.f32 %v23, 0.17677669
    %v26 = vpack.c.bf16 %v24, %v24
    %v27 = vpack.c.bf16 %v25, %v25
    %v28 = vld [vmem:[%s1] sm:$0xff]
    %v29 = vld [vmem:[%s1 + $0x8] sm:$0xff]
    %v30 = vld [vmem:[%s1 + $0x10] sm:$0xff]
    %v31 = vld [vmem:[%s1 + $0x18] sm:$0xff]
    %v32 = vld [vmem:[%s1 + $0x20] sm:$0xff]
    %v33 = vld [vmem:[%s1 + $0x28] sm:$0xff]
    %v34 = vld [vmem:[%s1 + $0x30] sm:$0xff]
    %v35 = vld [vmem:[%s1 + $0x38] sm:$0xff]
    %v36 = vld [vmem:[%s1 + $0x40] sm:$0xff]
    %v37 = vld [vmem:[%s1 + $0x48] sm:$0xff]
    %v38 = vld [vmem:[%s1 + $0x50] sm:$0xff]
    %v39 = vld [vmem:[%s1 + $0x58] sm:$0xff]
    %v40 = vld [vmem:[%s1 + $0x60] sm:$0xff]
    %v41 = vld [vmem:[%s1 + $0x68] sm:$0xff]
    %v42 = vld [vmem:[%s1 + $0x70] sm:$0xff]
    %v43 = vld [vmem:[%s1 + $0x78] sm:$0xff]
    %v44 = vld [vmem:[%s1 + $0x80] sm:$0xff]
    %v45 = vld [vmem:[%s1 + $0x88] sm:$0xff]
    %v46 = vld [vmem:[%s1 + $0x90] sm:$0xff]
    %v47 = vld [vmem:[%s1 + $0x98] sm:$0xff]
    %v48 = vld [vmem:[%s1 + $0xa0] sm:$0xff]
    %v49 = vld [vmem:[%s1 + $0xa8] sm:$0xff]
    %v50 = vld [vmem:[%s1 + $0xb0] sm:$0xff]
    %v51 = vld [vmem:[%s1 + $0xb8] sm:$0xff]
    %v52 = vld [vmem:[%s1 + $0xc0] sm:$0xff]
    %v53 = vld [vmem:[%s1 + $0xc8] sm:$0xff]
    %v54 = vld [vmem:[%s1 + $0xd0] sm:$0xff]
    %v55 = vld [vmem:[%s1 + $0xd8] sm:$0xff]
    %v56 = vld [vmem:[%s1 + $0xe0] sm:$0xff]
    %v57 = vld [vmem:[%s1 + $0xe8] sm:$0xff]
    %v58 = vld [vmem:[%s1 + $0xf0] sm:$0xff]
    %v59 = vld [vmem:[%s1 + $0xf8] sm:$0xff]
    %v60 = vpack.c.bf16 %v29, %v28
    %v61 = vpack.c.bf16 %v31, %v30
    %v62 = vpack.c.bf16 %v33, %v32
    %v63 = vpack.c.bf16 %v35, %v34
    %v64 = vpack.c.bf16 %v37, %v36
    %v65 = vpack.c.bf16 %v39, %v38
    %v66 = vpack.c.bf16 %v41, %v40
    %v67 = vpack.c.bf16 %v43, %v42
    %v68 = vpack.c.bf16 %v45, %v44
    %v69 = vpack.c.bf16 %v47, %v46
    %v70 = vpack.c.bf16 %v49, %v48
    %v71 = vpack.c.bf16 %v51, %v50
    %v72 = vpack.c.bf16 %v53, %v52
    %v73 = vpack.c.bf16 %v55, %v54
    %v74 = vpack.c.bf16 %v57, %v56
    %v75 = vpack.c.bf16 %v59, %v58
    %vm76 = vcmask 261120
    %v78 = vsel %vm76, %v26, 0
    %v81 = vsel %vm76, %v60, 0
    %v84 = vsel %vm76, %v61, 0
    %v87 = vsel %vm76, %v62, 0
    %v90 = vsel %vm76, %v63, 0
    %v93 = vsel %vm76, %v64, 0
    %v96 = vsel %vm76, %v65, 0
    %v99 = vsel %vm76, %v66, 0
    %v102 = vsel %vm76, %v67, 0
    %104 = vmatprep.subr.bf16.mxu0 0
    %105 = vmatpush1.bf16.xpose.msra.mxu0 %v81
    %106 = vmatprep.subr.bf16.mxu0 0
    %107 = vmatpush1.bf16.xpose.msra.mxu0 %v84
    %108 = vmatprep.subr.bf16.mxu0 0
    %109 = vmatpush1.bf16.xpose.msra.mxu0 %v87
    %110 = vmatprep.subr.bf16.mxu0 0
    %111 = vmatpush1.bf16.xpose.msra.mxu0 %v90
    %112 = vmatprep.subr.bf16.mxu0 0
    %113 = vmatpush1.bf16.xpose.msra.mxu0 %v93
    %114 = vmatprep.subr.bf16.mxu0 0
    %115 = vmatpush1.bf16.xpose.msra.mxu0 %v96
    %116 = vmatprep.subr.bf16.mxu0 0
    %117 = vmatpush1.bf16.xpose.msra.mxu0 %v99
    %118 = vmatprep.subr.bf16.mxu0 0
    %119 = vmatpush1.bf16.xpose.msra.mxu0 %v102
    %120 = vmatprep.subr.bf16.mxu0 0
    %121 = vmatpush1.bf16.xpose.msra.mxu0 0
    %122 = vmatprep.subr.bf16.mxu0 0
    %123 = vmatpush1.bf16.xpose.msra.mxu0 0
    %124 = vmatprep.subr.bf16.mxu0 0
    %125 = vmatpush1.bf16.xpose.msra.mxu0 0
    %126 = vmatprep.subr.bf16.mxu0 0
    %127 = vmatpush1.bf16.xpose.msra.mxu0 0
    %128 = vmatprep.subr.bf16.mxu0 0
    %129 = vmatpush1.bf16.xpose.msra.mxu0 0
    %130 = vmatprep.subr.bf16.mxu0 0
    %131 = vmatpush1.bf16.xpose.msra.mxu0 0
    %132 = vmatprep.subr.bf16.mxu0 0
    %133 = vmatpush1.bf16.xpose.msra.mxu0 0
    %134 = vmatprep.subr.bf16.mxu0 0
    %135 = vmatpush1.bf16.xpose.msra.mxu0 0
    %136 = vmatprep.mubr.bf16.mxu0 0
    %137 = vmatmul.mubr.bf16.gmra.mrb[0].mxu0 %v78
    %v138 = vpop.f32.mrb[0].mxu0
    %v139 = vadd.f32 0.0, %v138
    %v140 = vpop.f32.mrb[0].mxu0
    %v141 = vpop.f32.mrb[0].mxu0
    %v142 = vpop.f32.mrb[0].mxu0
    %143 = vdwg.mxu0
    %v145 = vsel %vm76, %v27, 0
    %v148 = vsel %vm76, %v68, 0
    %v151 = vsel %vm76, %v69, 0
    %v154 = vsel %vm76, %v70, 0
    %v157 = vsel %vm76, %v71, 0
    %v160 = vsel %vm76, %v72, 0
    %v163 = vsel %vm76, %v73, 0
    %v166 = vsel %vm76, %v74, 0
    %v169 = vsel %vm76, %v75, 0
    %171 = vmatprep.subr.bf16.mxu0 0
    %172 = vmatpush1.bf16.xpose.msra.mxu0 %v148
    %173 = vmatprep.subr.bf16.mxu0 0
    %174 = vmatpush1.bf16.xpose.msra.mxu0 %v151
    %175 = vmatprep.subr.bf16.mxu0 0
    %176 = vmatpush1.bf16.xpose.msra.mxu0 %v154
    %177 = vmatprep.subr.bf16.mxu0 0
    %178 = vmatpush1.bf16.xpose.msra.mxu0 %v157
    %179 = vmatprep.subr.bf16.mxu0 0
    %180 = vmatpush1.bf16.xpose.msra.mxu0 %v160
    %181 = vmatprep.subr.bf16.mxu0 0
    %182 = vmatpush1.bf16.xpose.msra.mxu0 %v163
    %183 = vmatprep.subr.bf16.mxu0 0
    %184 = vmatpush1.bf16.xpose.msra.mxu0 %v166
    %185 = vmatprep.subr.bf16.mxu0 0
    %186 = vmatpush1.bf16.xpose.msra.mxu0 %v169
    %187 = vmatprep.subr.bf16.mxu0 0
    %188 = vmatpush1.bf16.xpose.msra.mxu0 0
    %189 = vmatprep.subr.bf16.mxu0 0
    %190 = vmatpush1.bf16.xpose.msra.mxu0 0
    %191 = vmatprep.subr.bf16.mxu0 0
    %192 = vmatpush1.bf16.xpose.msra.mxu0 0
    %193 = vmatprep.subr.bf16.mxu0 0
    %194 = vmatpush1.bf16.xpose.msra.mxu0 0
    %195 = vmatprep.subr.bf16.mxu0 0
    %196 = vmatpush1.bf16.xpose.msra.mxu0 0
    %197 = vmatprep.subr.bf16.mxu0 0
    %198 = vmatpush1.bf16.xpose.msra.mxu0 0
    %199 = vmatprep.subr.bf16.mxu0 0
    %200 = vmatpush1.bf16.xpose.msra.mxu0 0
    %201 = vmatprep.subr.bf16.mxu0 0
    %202 = vmatpush1.bf16.xpose.msra.mxu0 0
    %203 = vmatprep.mubr.bf16.mxu0 0
    %204 = vmatmul.mubr.bf16.gmra.mrb[0].mxu0 %v145
    %v205 = vpop.f32.mrb[0].mxu0
    %v206 = vadd.f32 0.0, %v205
    %v207 = vpop.f32.mrb[0].mxu0
    %v208 = vpop.f32.mrb[0].mxu0
    %v209 = vpop.f32.mrb[0].mxu0
    %210 = vdwg.mxu0
    %v211 = vld [vmem:[%s3] sm:$0xff]
    %v212 = vld [vmem:[%s3 + $0x8] sm:$0xff]
    %vm213 = vcmp.ne.s32.totalorder %v211, 0
    %vm214 = vcmp.ne.s32.totalorder %v212, 0
    %v215 = vsel %vm213, -1000000.0, %v139
    %v216 = vsel %vm214, -1000000.0, %v206
    %v217 = vlaneseq
    %v218 = vand.u32 %v217, 127
    %vm219 = vcmp.ge.s32.totalorder %v218, 8
    %v220 = vsel %vm219, -inf, %v215
    %v221 = vsel %vm219, -inf, %v216
    %222 = vmax.xlane.f32.xlu0 %v220
    %v223 = vpop.xlane.xlu0 %222
    %224 = vmax.xlane.f32.xlu0 %v221
    %v225 = vpop.xlane.xlu0 %224
    %v226 = vsub.f32 %v220, %v223
    %v227 = vsub.f32 %v221, %v225
    %v228 = vmul.f32 %v226, 1.442695
    %v229 = vpow.pop %v228
    %v230 = vmul.f32 %v227, 1.442695
    %v231 = vpow.pop %v230
    %232 = vadd.xlane.f32.xlu0 %v229
    %v233 = vpop.xlane.xlu0 %232
    %234 = vadd.xlane.f32.xlu0 %v231
    %v235 = vpop.xlane.xlu0 %234
    %v236 = vrcp.pop %v233
    %v237 = vrcp.pop %v235
    %v238 = vmul.f32 %v229, %v236
    %v239 = vmul.f32 %v231, %v237
    %v240 = vpack.c.bf16 %v238, %v238
    %v241 = vpack.c.bf16 %v239, %v239
    %v242 = vld [vmem:[%s2] sm:$0xff]
    %v243 = vld [vmem:[%s2 + $0x8] sm:$0xff]
    %v244 = vld [vmem:[%s2 + $0x10] sm:$0xff]
    %v245 = vld [vmem:[%s2 + $0x18] sm:$0xff]
    %v246 = vld [vmem:[%s2 + $0x20] sm:$0xff]
    %v247 = vld [vmem:[%s2 + $0x28] sm:$0xff]
    %v248 = vld [vmem:[%s2 + $0x30] sm:$0xff]
    %v249 = vld [vmem:[%s2 + $0x38] sm:$0xff]
    %v250 = vld [vmem:[%s2 + $0x40] sm:$0xff]
    %v251 = vld [vmem:[%s2 + $0x48] sm:$0xff]
    %v252 = vld [vmem:[%s2 + $0x50] sm:$0xff]
    %v253 = vld [vmem:[%s2 + $0x58] sm:$0xff]
    %v254 = vld [vmem:[%s2 + $0x60] sm:$0xff]
    %v255 = vld [vmem:[%s2 + $0x68] sm:$0xff]
    %v256 = vld [vmem:[%s2 + $0x70] sm:$0xff]
    %v257 = vld [vmem:[%s2 + $0x78] sm:$0xff]
    %v258 = vld [vmem:[%s2 + $0x80] sm:$0xff]
    %v259 = vld [vmem:[%s2 + $0x88] sm:$0xff]
    %v260 = vld [vmem:[%s2 + $0x90] sm:$0xff]
    %v261 = vld [vmem:[%s2 + $0x98] sm:$0xff]
    %v262 = vld [vmem:[%s2 + $0xa0] sm:$0xff]
    %v263 = vld [vmem:[%s2 + $0xa8] sm:$0xff]
    %v264 = vld [vmem:[%s2 + $0xb0] sm:$0xff]
    %v265 = vld [vmem:[%s2 + $0xb8] sm:$0xff]
    %v266 = vld [vmem:[%s2 + $0xc0] sm:$0xff]
    %v267 = vld [vmem:[%s2 + $0xc8] sm:$0xff]
    %v268 = vld [vmem:[%s2 + $0xd0] sm:$0xff]
    %v269 = vld [vmem:[%s2 + $0xd8] sm:$0xff]
    %v270 = vld [vmem:[%s2 + $0xe0] sm:$0xff]
    %v271 = vld [vmem:[%s2 + $0xe8] sm:$0xff]
    %v272 = vld [vmem:[%s2 + $0xf0] sm:$0xff]
    %v273 = vld [vmem:[%s2 + $0xf8] sm:$0xff]
    %v274 = vpack.c.bf16 %v243, %v242
    %v275 = vpack.c.bf16 %v245, %v244
    %v276 = vpack.c.bf16 %v247, %v246
    %v277 = vpack.c.bf16 %v249, %v248
    %v278 = vpack.c.bf16 %v251, %v250
    %v279 = vpack.c.bf16 %v253, %v252
    %v280 = vpack.c.bf16 %v255, %v254
    %v281 = vpack.c.bf16 %v257, %v256
    %v282 = vpack.c.bf16 %v259, %v258
    %v283 = vpack.c.bf16 %v261, %v260
    %v284 = vpack.c.bf16 %v263, %v262
    %v285 = vpack.c.bf16 %v265, %v264
    %v286 = vpack.c.bf16 %v267, %v266
    %v287 = vpack.c.bf16 %v269, %v268
    %v288 = vpack.c.bf16 %v271, %v270
    %v289 = vpack.c.bf16 %v273, %v272
    %290 = vmatprep.subr.bf16.mxu0 0
    %291 = vmatpush1.bf16.msra.mxu0 %v274
    %292 = vmatprep.subr.bf16.mxu0 0
    %293 = vmatpush1.bf16.msra.mxu0 %v275
    %294 = vmatprep.subr.bf16.mxu0 0
    %295 = vmatpush1.bf16.msra.mxu0 %v276
    %296 = vmatprep.subr.bf16.mxu0 0
    %297 = vmatpush1.bf16.msra.mxu0 %v277
    %298 = vmatprep.subr.bf16.mxu0 0
    %299 = vmatpush1.bf16.msra.mxu0 %v278
    %300 = vmatprep.subr.bf16.mxu0 0
    %301 = vmatpush1.bf16.msra.mxu0 %v279
    %302 = vmatprep.subr.bf16.mxu0 0
    %303 = vmatpush1.bf16.msra.mxu0 %v280
    %304 = vmatprep.subr.bf16.mxu0 0
    %305 = vmatpush1.bf16.msra.mxu0 %v281
    %306 = vmatprep.subr.bf16.mxu0 0
    %307 = vmatpush1.bf16.msra.mxu0 0
    %308 = vmatprep.subr.bf16.mxu0 0
    %309 = vmatpush1.bf16.msra.mxu0 0
    %310 = vmatprep.subr.bf16.mxu0 0
    %311 = vmatpush1.bf16.msra.mxu0 0
    %312 = vmatprep.subr.bf16.mxu0 0
    %313 = vmatpush1.bf16.msra.mxu0 0
    %314 = vmatprep.subr.bf16.mxu0 0
    %315 = vmatpush1.bf16.msra.mxu0 0
    %316 = vmatprep.subr.bf16.mxu0 0
    %317 = vmatpush1.bf16.msra.mxu0 0
    %318 = vmatprep.subr.bf16.mxu0 0
    %319 = vmatpush1.bf16.msra.mxu0 0
    %320 = vmatprep.subr.bf16.mxu0 0
    %321 = vmatpush1.bf16.msra.mxu0 0
    %322 = vmatprep.mubr.bf16.mxu0 0
    %323 = vmatmul.mubr.bf16.gmra.mrb[0].mxu0 %v240
    %v324 = vpop.f32.mrb[0].mxu0
    %v325 = vadd.f32 0.0, %v324
    %v326 = vpop.f32.mrb[0].mxu0
    %v327 = vpop.f32.mrb[0].mxu0
    %v328 = vpop.f32.mrb[0].mxu0
    %329 = vdwg.mxu0
    %330 = vmatprep.subr.bf16.mxu0 0
    %331 = vmatpush1.bf16.msra.mxu0 %v282
    %332 = vmatprep.subr.bf16.mxu0 0
    %333 = vmatpush1.bf16.msra.mxu0 %v283
    %334 = vmatprep.subr.bf16.mxu0 0
    %335 = vmatpush1.bf16.msra.mxu0 %v284
    %336 = vmatprep.subr.bf16.mxu0 0
    %337 = vmatpush1.bf16.msra.mxu0 %v285
    %338 = vmatprep.subr.bf16.mxu0 0
    %339 = vmatpush1.bf16.msra.mxu0 %v286
    %340 = vmatprep.subr.bf16.mxu0 0
    %341 = vmatpush1.bf16.msra.mxu0 %v287
    %342 = vmatprep.subr.bf16.mxu0 0
    %343 = vmatpush1.bf16.msra.mxu0 %v288
    %344 = vmatprep.subr.bf16.mxu0 0
    %345 = vmatpush1.bf16.msra.mxu0 %v289
    %346 = vmatprep.subr.bf16.mxu0 0
    %347 = vmatpush1.bf16.msra.mxu0 0
    %348 = vmatprep.subr.bf16.mxu0 0
    %349 = vmatpush1.bf16.msra.mxu0 0
    %350 = vmatprep.subr.bf16.mxu0 0
    %351 = vmatpush1.bf16.msra.mxu0 0
    %352 = vmatprep.subr.bf16.mxu0 0
    %353 = vmatpush1.bf16.msra.mxu0 0
    %354 = vmatprep.subr.bf16.mxu0 0
    %355 = vmatpush1.bf16.msra.mxu0 0
    %356 = vmatprep.subr.bf16.mxu0 0
    %357 = vmatpush1.bf16.msra.mxu0 0
    %358 = vmatprep.subr.bf16.mxu0 0
    %359 = vmatpush1.bf16.msra.mxu0 0
    %360 = vmatprep.subr.bf16.mxu0 0
    %361 = vmatpush1.bf16.msra.mxu0 0
    %362 = vmatprep.mubr.bf16.mxu0 0
    %363 = vmatmul.mubr.bf16.gmra.mrb[0].mxu0 %v241
    %v364 = vpop.f32.mrb[0].mxu0
    %v365 = vadd.f32 0.0, %v364
    %v366 = vpop.f32.mrb[0].mxu0
    %v367 = vpop.f32.mrb[0].mxu0
    %v368 = vpop.f32.mrb[0].mxu0
    %369 = vdwg.mxu0
    %370 = vst [vmem:[#allocation4] sm:$0xff] %v238
    %371 = vst [vmem:[#allocation4 + $0x8] sm:$0xff] %v239
    %372 = vst.msk [vmem:[#allocation2] sm:$0xff] %vm76, %v325
    %373 = vst.msk [vmem:[#allocation2 + $0x8] sm:$0xff] %vm76, %v365
    // Predicated region
    $region18: #{tpu_custom_call.1} parent=1 // pred_check
      _
    $region19: #{tpu_custom_call.1} parent=1 // pred_check_branch
      %375 = sbr.rel (0) target = $region21
    $region20: #{tpu_custom_call.1} parent=1 // pred_region
      %s377 = ssub.s32 256, 256
      %378 = vsyncadd [#allocation3], %s377
      %s379 = sshll.u32 [#allocation2], 4
      %s380 = int_to_ptr.vmem [resolvable:$true] %s379
      %385 = dma.vmem_to_hbm [thread:$0]  %s380, 256, %s4, [#allocation3], 128, 128, 8
    $region21: #{tpu_custom_call.1} parent=1 // pred_fallthru
      _
    // Predicated region
    $region22: #{tpu_custom_call.1} parent=1 // pred_check
      _
    $region23: #{tpu_custom_call.1} parent=1 // pred_check_branch
      %387 = sbr.rel (0) target = $region25
    $region24: #{tpu_custom_call.1} parent=1 // pred_region
      %s389 = ssub.s32 256, 256
      %390 = vsyncadd [#allocation5], %s389
      %s391 = sshll.u32 [#allocation4], 4
      %s392 = int_to_ptr.vmem [resolvable:$true] %s391
      %397 = dma.vmem_to_hbm [thread:$0]  %s392, 256, %s5, [#allocation5], 128, 128, 8
    $region25: #{tpu_custom_call.1} parent=1 // pred_fallthru
      _
    // Predicated region
    $region26: #{tpu_custom_call.1} parent=1 // pred_check
      _
    $region27: #{tpu_custom_call.1} parent=1 // pred_check_branch
      %399 = sbr.rel (0) target = $region29
    $region28: #{tpu_custom_call.1} parent=1 // pred_region
      %400 = dma.done [#allocation3], 256
    $region29: #{tpu_custom_call.1} parent=1 // pred_fallthru
      _
    // Predicated region
    $region30: #{tpu_custom_call.1} parent=1 // pred_check
      _
    $region31: #{tpu_custom_call.1} parent=1 // pred_check_branch
      %402 = sbr.rel (0) target = $region33
    $region32: #{tpu_custom_call.1} parent=1 // pred_region
      %403 = dma.done [#allocation5], 256
    $region33: #{tpu_custom_call.1} parent=1 // pred_fallthru
      _
    %404 = vsyncpa [#allocation3], 1
    %405 = vsyncpa [#allocation5], 1

</llo_original>
